<compile_context>
chip_gen: v6e
topology: v6e:2x2x1
jax: 0.10.0
libtpu: 0.0.40
codegen_flags: <defaults>
</compile_context>

<pallas_src>
import jax
import jax.numpy as jnp
import numpy as np
from jax.experimental import pallas as pl
from jax.experimental.pallas import tpu as pltpu


def _interp_coeffs(in_size: int, out_size: int):
    """PyTorch bilinear (align_corners=False, recompute_scale_factor=True):
       src = max(0, (in/out) * (dst + 0.5) - 0.5); i0 = floor(src);
       i1 = min(i0+1, in-1); lam = src - i0."""
    scale = in_size / out_size
    src = np.maximum(scale * (np.arange(out_size, dtype=np.float64) + 0.5) - 0.5, 0.0)
    i0 = np.minimum(np.floor(src).astype(np.int64), in_size - 1)
    i1 = np.minimum(i0 + 1, in_size - 1)
    lam = (src - i0).astype(np.float32)
    return i0, i1, lam


def _bilinear_matrix(in_size: int, out_size: int) -> np.ndarray:
    """1-D interpolation matrix (out_size, in_size); rows sum to 1."""
    i0, i1, lam = _interp_coeffs(in_size, out_size)
    w = np.zeros((out_size, in_size), dtype=np.float32)
    rows = np.arange(out_size)
    np.add.at(w, (rows, i0), 1.0 - lam)
    np.add.at(w, (rows, i1), lam)
    return w


def _downsample_kernel(x_ref, kt_ref, o_ref):
    # x_ref : (TB, H*W)      batch-major image block (rows = images)
    # kt_ref: (H*W, OH*OW)   fused bilinear weight (Wy ⊗ Wx)^T
    # o_ref : (TB, OH*OW)    batch-major output block — one lane-dense store
    o_ref[...] = jnp.dot(
        x_ref[...], kt_ref[...], preferred_element_type=jnp.float32
    ).astype(o_ref.dtype)


def _device_vmem_and_multicore():
    """Best-effort query: per-core VMEM bytes and whether the part is multi-TC (v7x)."""
    vmem = None
    try:
        vmem = int(getattr(pltpu.get_tpu_info(), "vmem_capacity_bytes", 0)) or None
    except Exception:
        vmem = None
    kind = ""
    try:
        kind = jax.devices()[0].device_kind.lower()
    except Exception:
        pass
    is_v7 = "7" in kind  # v7x: 2 TensorCores/chip, 64 MiB VMEM per TC
    if vmem is None:
        vmem = (64 if is_v7 else 128) * 1024 * 1024
    return vmem, is_v7


def _round_up(x: int, m: int) -> int:
    return ((x + m - 1) // m) * m


def downsample(x: jnp.ndarray, ratio: float) -> jnp.ndarray:
    """Bilinear downsample of an NCHW tensor by `ratio` (PyTorch semantics)."""
    n, c, h, w = x.shape
    oh = int(np.floor(h * ratio))
    ow = int(np.floor(w * ratio))
    hw, ohow = h * w, oh * ow
    b = n * c

    # Fused separable weight: out[b, oh*OW+ow] = sum_{h,w} K[oh*OW+ow, h*W+w] * x[b, h*W+w]
    k = np.kron(_bilinear_matrix(h, oh), _bilinear_matrix(w, ow))   # (OH*OW, H*W)

    if x.dtype == jnp.bfloat16:
        k_dtype = jnp.bfloat16                                      # bf16 MXU operands
    else:
        k_dtype = jnp.float32
        x = x.astype(jnp.float32)
    out_dtype = x.dtype
    kt = jnp.asarray(k.T, dtype=k_dtype)                            # (H*W, OH*OW)

    vmem_bytes, multi_tc = _device_vmem_and_multicore()
    vmem_limit = min(vmem_bytes // 2, 64 * 1024 * 1024)             # 64 MiB v5e/v6e, 32 MiB v7x
    budget = vmem_limit // 2                                        # headroom for scratch

    itemsize = jnp.dtype(x.dtype).itemsize
    row_bytes = (hw + ohow) * itemsize                              # per-image in + out bytes
    k_bytes = hw * ohow * jnp.dtype(k_dtype).itemsize
    avail = budget - 2 * k_bytes                                    # weight is buffered too
    if avail < 2 * 8 * row_bytes:
        # TODO(synk): factorized two-pass (Wy then Wx) path for images whose
        # Kronecker weight / minimal block no longer fits the VMEM budget.
        raise NotImplementedError("image too large for fused-Kronecker downsample kernel")

    tb_max = min(8192, max(8, (avail // (2 * row_bytes)) // 8 * 8))

    xf = x.reshape(b, hw)                                           # zero-copy view of NCHW
    if b <= 8:
        tb, b_pad = b, b                                            # tiny batch: full-dim block
    else:
        num_steps = -(-b // tb_max)                                 # cdiv
        if multi_tc and b >= 16:
            num_steps = max(num_steps, 2)                           # shard across the 2 TCs
        tb = _round_up(-(-b // num_steps), 8)
        b_pad = _round_up(b, tb)
    if b_pad != b:
        xf = jnp.pad(xf, ((0, b_pad - b), (0, 0)))

    grid = (b_pad // tb,)
    out_flat = pl.pallas_call(
        _downsample_kernel,
        out_shape=jax.ShapeDtypeStruct((b_pad, ohow), out_dtype),
        grid_spec=pltpu.PrefetchScalarGridSpec(
            num_scalar_prefetch=0,
            grid=grid,
            in_specs=[
                pl.BlockSpec((tb, hw), lambda i: (i, 0)),
                pl.BlockSpec((hw, ohow), lambda i: (0, 0)),
            ],
            out_specs=pl.BlockSpec((tb, ohow), lambda i: (i, 0)),
        ),
        compiler_params=pltpu.CompilerParams(
            dimension_semantics=("parallel",),
            vmem_limit_bytes=vmem_limit,
        ),
    )(xf, kt)

    return out_flat[:b].reshape(n, c, oh, ow)                       # zero-copy back to NCHW


def _reference_downsample(x: np.ndarray, ratio: float) -> np.ndarray:
    """Pure-numpy gather-based reference matching PyTorch bilinear interp."""
    n, c, h, w = x.shape
    oh = int(np.floor(h * ratio))
    ow = int(np.floor(w * ratio))
    y0, y1, ly = _interp_coeffs(h, oh)
    x0, x1, lx = _interp_coeffs(w, ow)
    out = np.zeros((n, c, oh, ow), dtype=np.float32)
    for ia, wa in ((y0, 1.0 - ly), (y1, ly)):
        for ib, wb in ((x0, 1.0 - lx), (x1, lx)):
            out += (wa[:, None] * wb[None, :]) * x[:, :, ia][:, :, :, ib]
    return out


if __name__ == "__main__":
    key = jax.random.PRNGKey(0)
    ratio = 0.5

    # Small shape consistent with the module's encoder input scale.
    n, c, h, w = 2, 4, 16, 16
    x = jax.random.normal(key, (n, c, h, w), dtype=jnp.float32)
    out = jax.block_until_ready(downsample(x, ratio))
    ref = _reference_downsample(np.asarray(x), ratio)
    np.testing.assert_allclose(np.asarray(out), ref, rtol=1e-5, atol=1e-5)

    # Larger batch: exercises the big-block / (v7x) multi-step parallel path.
    k2 = jax.random.split(key)[0]
    x2 = jax.random.normal(k2, (16, 16, 16, 16), dtype=jnp.float32)
    out2 = jax.block_until_ready(downsample(x2, ratio))
    ref2 = _reference_downsample(np.asarray(x2), ratio)
    np.testing.assert_allclose(np.asarray(out2), ref2, rtol=1e-5, atol=1e-5)

    print("KERNEL_OK")
</pallas_src>

<mosaic_0001>
module attributes {stable_mosaic.version = 11 : i64} {
  func.func @_downsample_kernel(%arg0: i32, %arg1: memref<8x256xf32, #tpu.memory_space<vmem>>, %arg2: memref<256x64xf32, #tpu.memory_space<vmem>>, %arg3: memref<8x64xf32, #tpu.memory_space<vmem>>) attributes {dimension_semantics = [#tpu.dimension_semantics<parallel>], iteration_bounds = array<i64: 1>, scalar_prefetch = 0 : i64, scratch_operands = 0 : i64, tpu.core_type = #tpu.core_type<tc>, window_params = [{transform_indices = @transform_0, window_bounds = array<i64: 8, 256>}, {pipeline_mode = #tpu.pipeline_mode<synchronous>, transform_indices = @transform_1, window_bounds = array<i64: 256, 64>}, {transform_indices = @transform_2, window_bounds = array<i64: 8, 64>}]} {
    %c0 = arith.constant 0 : index
    %c0_0 = arith.constant 0 : index
    %0 = vector.load %arg1[%c0, %c0_0] : memref<8x256xf32, #tpu.memory_space<vmem>>, vector<8x256xf32>
    %c0_1 = arith.constant 0 : index
    %c0_2 = arith.constant 0 : index
    %1 = vector.load %arg2[%c0_1, %c0_2] : memref<256x64xf32, #tpu.memory_space<vmem>>, vector<256x64xf32>
    %cst = arith.constant dense<0.000000e+00> : vector<8x64xf32>
    %2 = tpu.matmul %0, %1, %cst {dimension_numbers = #tpu.dot_dimension_numbers<[1], [0], [0], [1], [0, 0, 1, 1], [], []>} : vector<8x256xf32>, vector<256x64xf32>, vector<8x64xf32> -> vector<8x64xf32>
    %c0_3 = arith.constant 0 : index
    %c0_4 = arith.constant 0 : index
    %3 = vector.load %arg3[%c0_3, %c0_4] : memref<8x64xf32, #tpu.memory_space<vmem>>, vector<8x64xf32>
    tpu.vector_store %arg3[%c0_3, %c0_4], %2 {strides = array<i32>} : memref<8x64xf32, #tpu.memory_space<vmem>>, vector<8x64xf32>,
    return
  }
  func.func @transform_0(%arg0: i32) -> (i32, i32) {
    %c0_i32 = arith.constant 0 : i32
    %c0_i32_0 = arith.constant 0 : i32
    return %arg0, %c0_i32 : i32, i32
  }
  func.func @transform_1(%arg0: i32) -> (i32, i32) {
    %c0_i32 = arith.constant 0 : i32
    %c0_i32_0 = arith.constant 0 : i32
    %c0_i32_1 = arith.constant 0 : i32
    return %c0_i32, %c0_i32_0 : i32, i32
  }
  func.func @transform_2(%arg0: i32) -> (i32, i32) {
    %c0_i32 = arith.constant 0 : i32
    %c0_i32_0 = arith.constant 0 : i32
    return %arg0, %c0_i32 : i32, i32
  }
}

</mosaic_0001>

<llo_original>
// kernel: tpu_custom_call.1
$region0: #{tpu_custom_call.1}
  #allocation0 [shape = 'u32[]', space=smem, size = 0x4, offset = 0x4, fixed_abs, tag = 'smem constant byte address 0x4 - core index']
  #allocation1 [shape = 'u32[144,128]{1,0:T(1,128)}', space=vmem, size = 0x12000, scoped, tag = 'internal scratch']
  %s0 = inlined_call_operand.vmem [shape: f32[8,256], index: 0, kind: input, shape index: {}]
  %s1 = inlined_call_operand.vmem [shape: f32[256,64], index: 1, kind: input, shape index: {}]
  %s2 = inlined_call_operand.hbm [shape: f32[8,64], index: 2, kind: output, shape index: {}]
  %s3 = sld [smem:[#allocation0]]
  $region18: #{tpu_custom_call.1} parent=0
    _
  %s5 = ssub.s32 1, %s3
  %s6 = scalar_select 0, %s5, %s3
  $region1: #{tpu_custom_call.1} parent=0
    #allocation2 [shape = 'u8[4096]{0}', space=vmem, size = 0x1000, scoped, tag = 'output window, operand 0, single buffered']
    #allocation3 [shape = 's32[1]{0}', space=sflag, size = 0x4, scoped, tag = 'scoped memory for tpu_custom_call.1']
    %7 = vsyncpa [#allocation3], 0
    // Predicated region
    $region2: #{tpu_custom_call.1} parent=1 // pred_check
      _
    $region3: #{tpu_custom_call.1} parent=1 // pred_check_branch
      %9 = sbr.rel (0) target = $region5
    $region4: #{tpu_custom_call.1} parent=1 // pred_region
      _
    $region5: #{tpu_custom_call.1} parent=1 // pred_fallthru
      _
    // Predicated region
    $region6: #{tpu_custom_call.1} parent=1 // pred_check
      _
    $region7: #{tpu_custom_call.1} parent=1 // pred_check_branch
      %11 = sbr.rel (0) target = $region9
    $region8: #{tpu_custom_call.1} parent=1 // pred_region
      _
    $region9: #{tpu_custom_call.1} parent=1 // pred_fallthru
      _
    %v12 = vld [vmem:[%s0] sm:$0xff]
    %v13 = vld [vmem:[%s0 + $0x8] sm:$0xff]
    %v14 = vld [vmem:[%s1] sm:$0xff]
    %v15 = vld [vmem:[%s1 + $0x8] sm:$0xff]
    %v16 = vld [vmem:[%s1 + $0x10] sm:$0xff]
    %v17 = vld [vmem:[%s1 + $0x18] sm:$0xff]
    %v18 = vld [vmem:[%s1 + $0x20] sm:$0xff]
    %v19 = vld [vmem:[%s1 + $0x28] sm:$0xff]
    %v20 = vld [vmem:[%s1 + $0x30] sm:$0xff]
    %v21 = vld [vmem:[%s1 + $0x38] sm:$0xff]
    %v22 = vld [vmem:[%s1 + $0x40] sm:$0xff]
    %v23 = vld [vmem:[%s1 + $0x48] sm:$0xff]
    %v24 = vld [vmem:[%s1 + $0x50] sm:$0xff]
    %v25 = vld [vmem:[%s1 + $0x58] sm:$0xff]
    %v26 = vld [vmem:[%s1 + $0x60] sm:$0xff]
    %v27 = vld [vmem:[%s1 + $0x68] sm:$0xff]
    %v28 = vld [vmem:[%s1 + $0x70] sm:$0xff]
    %v29 = vld [vmem:[%s1 + $0x78] sm:$0xff]
    %v30 = vld [vmem:[%s1 + $0x80] sm:$0xff]
    %v31 = vld [vmem:[%s1 + $0x88] sm:$0xff]
    %v32 = vld [vmem:[%s1 + $0x90] sm:$0xff]
    %v33 = vld [vmem:[%s1 + $0x98] sm:$0xff]
    %v34 = vld [vmem:[%s1 + $0xa0] sm:$0xff]
    %v35 = vld [vmem:[%s1 + $0xa8] sm:$0xff]
    %v36 = vld [vmem:[%s1 + $0xb0] sm:$0xff]
    %v37 = vld [vmem:[%s1 + $0xb8] sm:$0xff]
    %v38 = vld [vmem:[%s1 + $0xc0] sm:$0xff]
    %v39 = vld [vmem:[%s1 + $0xc8] sm:$0xff]
    %v40 = vld [vmem:[%s1 + $0xd0] sm:$0xff]
    %v41 = vld [vmem:[%s1 + $0xd8] sm:$0xff]
    %v42 = vld [vmem:[%s1 + $0xe0] sm:$0xff]
    %v43 = vld [vmem:[%s1 + $0xe8] sm:$0xff]
    %v44 = vld [vmem:[%s1 + $0xf0] sm:$0xff]
    %v45 = vld [vmem:[%s1 + $0xf8] sm:$0xff]
    %46 = vmatprep.subr.mxu0 0.0
    %47 = vmatpush1.msra.mxu0 %v29
    %48 = vmatprep.subr.mxu0 0.0
    %49 = vmatpush1.msra.mxu0 %v28
    %50 = vmatprep.subr.mxu0 0.0
    %51 = vmatpush1.msra.mxu0 %v27
    %52 = vmatprep.subr.mxu0 0.0
    %53 = vmatpush1.msra.mxu0 %v26
    %54 = vmatprep.subr.mxu0 0.0
    %55 = vmatpush1.msra.mxu0 %v25
    %56 = vmatprep.subr.mxu0 0.0
    %57 = vmatpush1.msra.mxu0 %v24
    %58 = vmatprep.subr.mxu0 0.0
    %59 = vmatpush1.msra.mxu0 %v23
    %60 = vmatprep.subr.mxu0 0.0
    %61 = vmatpush1.msra.mxu0 %v22
    %62 = vmatprep.subr.mxu0 0.0
    %63 = vmatpush1.msra.mxu0 %v21
    %64 = vmatprep.subr.mxu0 0.0
    %65 = vmatpush1.msra.mxu0 %v20
    %66 = vmatprep.subr.mxu0 0.0
    %67 = vmatpush1.msra.mxu0 %v19
    %68 = vmatprep.subr.mxu0 0.0
    %69 = vmatpush1.msra.mxu0 %v18
    %70 = vmatprep.subr.mxu0 0.0
    %71 = vmatpush1.msra.mxu0 %v17
    %72 = vmatprep.subr.mxu0 0.0
    %73 = vmatpush1.msra.mxu0 %v16
    %74 = vmatprep.subr.mxu0 0.0
    %75 = vmatpush1.msra.mxu0 %v15
    %76 = vmatprep.subr.mxu0 0.0
    %77 = vmatpush1.msra.mxu0 %v14
    %78 = vmatprep.subr.mxu0 0.0
    %79 = vmatpush2.msra.mxu0 %v45
    %80 = vmatprep.subr.mxu0 0.0
    %81 = vmatpush2.msra.mxu0 %v44
    %82 = vmatprep.subr.mxu0 0.0
    %83 = vmatpush2.msra.mxu0 %v43
    %84 = vmatprep.subr.mxu0 0.0
    %85 = vmatpush2.msra.mxu0 %v42
    %86 = vmatprep.subr.mxu0 0.0
    %87 = vmatpush2.msra.mxu0 %v41
    %88 = vmatprep.subr.mxu0 0.0
    %89 = vmatpush2.msra.mxu0 %v40
    %90 = vmatprep.subr.mxu0 0.0
    %91 = vmatpush2.msra.mxu0 %v39
    %92 = vmatprep.subr.mxu0 0.0
    %93 = vmatpush2.msra.mxu0 %v38
    %94 = vmatprep.subr.mxu0 0.0
    %95 = vmatpush2.msra.mxu0 %v37
    %96 = vmatprep.subr.mxu0 0.0
    %97 = vmatpush2.msra.mxu0 %v36
    %98 = vmatprep.subr.mxu0 0.0
    %99 = vmatpush2.msra.mxu0 %v35
    %100 = vmatprep.subr.mxu0 0.0
    %101 = vmatpush2.msra.mxu0 %v34
    %102 = vmatprep.subr.mxu0 0.0
    %103 = vmatpush2.msra.mxu0 %v33
    %104 = vmatprep.subr.mxu0 0.0
    %105 = vmatpush2.msra.mxu0 %v32
    %106 = vmatprep.subr.mxu0 0.0
    %107 = vmatpush2.msra.mxu0 %v31
    %108 = vmatprep.subr.mxu0 0.0
    %109 = vmatpush2.msra.mxu0 %v30
    %110 = vmatprep.mubr.f32.mxu0 %v13
    %111 = vmatmul.mubr.f32.gmra.mxu0 %v12
    %v112 = vpop.f32.mrf.mxu0
    %v113 = vadd.f32 0.0, %v112
    %v114 = vpop.f32.mrf.mxu0
    %115 = vdwg.mxu0
    %vm116 = vcmask 523264
    %117 = vst.msk [vmem:[#allocation2] sm:$0xff] %vm116, %v113
    // Predicated region
    $region10: #{tpu_custom_call.1} parent=1 // pred_check
      _
    $region11: #{tpu_custom_call.1} parent=1 // pred_check_branch
      %119 = sbr.rel (0) target = $region13
    $region12: #{tpu_custom_call.1} parent=1 // pred_region
      %s121 = ssub.s32 128, 128
      %122 = vsyncadd [#allocation3], %s121
      %s124 = sshll.u32 [#allocation2], 4
      %s125 = int_to_ptr.vmem [resolvable:$true] %s124
      %127 = dma.vmem_to_hbm [thread:$0]  %s125, 128, %s2, [#allocation3]
    $region13: #{tpu_custom_call.1} parent=1 // pred_fallthru
      _
    // Predicated region
    $region14: #{tpu_custom_call.1} parent=1 // pred_check
      _
    $region15: #{tpu_custom_call.1} parent=1 // pred_check_branch
      %129 = sbr.rel (0) target = $region17
    $region16: #{tpu_custom_call.1} parent=1 // pred_region
      %130 = dma.done [#allocation3], 128
    $region17: #{tpu_custom_call.1} parent=1 // pred_fallthru
      _
    %131 = vsyncpa [#allocation3], 1

</llo_original>
